<compile_context>
chip_gen: v6e
topology: v6e:2x2x1
jax: 0.10.0
libtpu: 0.0.40
codegen_flags: <defaults>
</compile_context>

<pallas_src>
import jax
import jax.numpy as jnp
from jax.experimental import pallas as pl
from jax.experimental.pallas import tpu as pltpu


def _make_hbm_copy_kernel(num_chunks, chunk_bounds):
    """Kernel copying src->dst HBM with `num_chunks` outstanding DMAs."""

    def kernel(src_hbm_ref, dst_hbm_ref, dma_sems):
        copies = []
        # Issue every DMA before waiting on any: multiple outstanding
        # descriptors hide per-descriptor issue latency on large banks.
        for c in range(num_chunks):
            start = chunk_bounds[c]
            size = chunk_bounds[c + 1] - chunk_bounds[c]
            cp = pltpu.make_async_copy(
                src_hbm_ref.at[pl.ds(start, size), :],
                dst_hbm_ref.at[pl.ds(start, size), :],
                dma_sems.at[c],
            )
            cp.start()
            copies.append(cp)
        for cp in copies:
            cp.wait()

    return kernel


# Banks below this size use a single DMA; above it, split into row chunks.
_CHUNK_THRESHOLD_BYTES = 4 * 1024 * 1024
_MAX_CHUNKS = 8


def _materialize_components(components):
    """Copy the component bank into a fresh buffer with a Pallas DMA kernel."""
    num_components, feature_dim = components.shape

    if components.nbytes >= _CHUNK_THRESHOLD_BYTES:
        num_chunks = max(1, min(_MAX_CHUNKS, num_components))
    else:
        num_chunks = 1
    # Static, roughly equal row partition (computed at trace time).
    chunk_bounds = tuple(
        (i * num_components) // num_chunks for i in range(num_chunks + 1)
    )

    kernel = _make_hbm_copy_kernel(num_chunks, chunk_bounds)

    return pl.pallas_call(
        kernel,
        out_shape=jax.ShapeDtypeStruct(
            (num_components, feature_dim), components.dtype
        ),
        # Raw HBM refs on both sides; the kernel drives the DMA itself, so no
        # VMEM staging or tile sizing is needed on any chip generation.
        in_specs=[pl.BlockSpec(memory_space=pl.ANY)],
        out_specs=pl.BlockSpec(memory_space=pl.ANY),
        scratch_shapes=[pltpu.SemaphoreType.DMA((num_chunks,))],
        cost_estimate=pl.CostEstimate(
            flops=0,
            transcendentals=0,
            bytes_accessed=2 * components.nbytes,
        ),
    )(components)


def labeled_components_forward(components, labels, *, materialize=False):
    """JAX equivalent of LabeledComponents.forward() -> (components, labels).

    forward() is a pure identity, so by default both tensors are returned
    unchanged (matching the PyTorch semantics of returning the parameter
    tensors, and eliminating the copy per the perf review). Set
    materialize=True to force a fresh output buffer via the HBM->HBM DMA
    kernel.
    """
    if materialize:
        return _materialize_components(components), labels
    return components, labels


class LabeledComponents:
    """Minimal JAX counterpart of prototorch's LabeledComponents.

    distribution = (num_classes, prototypes_per_class) -> equal labels,
    i.e. labels = [0]*ppc + [1]*ppc + ...  (EqualLabelsInitializer semantics).
    Components are initialized deterministically from a PRNG key (stand-in for
    the ComponentsInitializer).
    """

    def __init__(self, distribution, feature_dim, key):
        num_classes, protos_per_class = distribution
        self.distribution = [protos_per_class] * num_classes
        # EqualLabelsInitializer.generate(): arange(num_classes) repeated ppc times.
        self._labels = jnp.repeat(
            jnp.arange(num_classes, dtype=jnp.int32), protos_per_class
        )
        num_components = int(self._labels.shape[0])
        # Deterministic synthetic initializer (stand-in for ComponentsInitializer).
        self._components = jax.random.normal(
            key, (num_components, feature_dim), dtype=jnp.float32
        )

    def forward(self, materialize=False):
        return labeled_components_forward(
            self._components, self._labels, materialize=materialize
        )


if __name__ == "__main__":
    key = jax.random.PRNGKey(0)
    # Small shapes: 4 classes x 2 prototypes/class = 8 components, 32 features.
    module = LabeledComponents(distribution=(4, 2), feature_dim=32, key=key)

    # Default (recommended) path: pure identity, no copy kernel.
    comps_id, labels_id = module.forward()
    comps_id = jax.block_until_ready(comps_id)
    labels_id = jax.block_until_ready(labels_id)
    assert comps_id.shape == (8, 32) and comps_id.dtype == jnp.float32
    assert labels_id.shape == (8,) and labels_id.dtype == jnp.int32
    assert bool(jnp.all(comps_id == module._components))
    assert bool(jnp.all(labels_id == module._labels))

    # Materialized path: exercises the Pallas HBM->HBM DMA copy kernel once.
    comps, labels = module.forward(materialize=True)
    comps = jax.block_until_ready(comps)
    labels = jax.block_until_ready(labels)
    assert comps.shape == (8, 32) and comps.dtype == jnp.float32
    assert labels.shape == (8,) and labels.dtype == jnp.int32
    assert bool(jnp.all(comps == module._components))
    assert bool(jnp.all(labels == module._labels))

    print("KERNEL_OK")
</pallas_src>

<mosaic_0001>
module attributes {stable_mosaic.version = 11 : i64} {
  func.func @kernel(%arg0: memref<8x32xf32, #tpu.memory_space<any>>, %arg1: memref<8x32xf32, #tpu.memory_space<any>>, %arg2: memref<1x!tpu.dma_semaphore, #tpu.memory_space<semaphore_mem>>) attributes {dimension_semantics = [], scalar_prefetch = 0 : i64, scratch_operands = 1 : i64, tpu.core_type = #tpu.core_type<tc>} {
    %c0_i32 = arith.constant 0 : i32
    %c0_i32_0 = arith.constant 0 : i32
    %c0_i32_1 = arith.constant 0 : i32
    %0 = tpu.memref_slice %arg0[%c0_i32_0, %c0_i32_1] : memref<8x32xf32, #tpu.memory_space<any>> -> memref<8x32xf32, #tpu.memory_space<any>>
    %c0_i32_2 = arith.constant 0 : i32
    %c0_i32_3 = arith.constant 0 : i32
    %1 = tpu.memref_slice %arg1[%c0_i32_2, %c0_i32_3] : memref<8x32xf32, #tpu.memory_space<any>> -> memref<8x32xf32, #tpu.memory_space<any>>
    %2 = tpu.memref_slice %arg2[%c0_i32] : memref<1x!tpu.dma_semaphore, #tpu.memory_space<semaphore_mem>> -> memref<1x!tpu.dma_semaphore, #tpu.memory_space<semaphore_mem>>
    %3 = tpu.memref_squeeze %2 : memref<1x!tpu.dma_semaphore, #tpu.memory_space<semaphore_mem>> -> memref<!tpu.dma_semaphore, #tpu.memory_space<semaphore_mem>>
    tpu.enqueue_dma source(%0 : memref<8x32xf32, #tpu.memory_space<any>>) target(%1 : memref<8x32xf32, #tpu.memory_space<any>>) target_semaphore(%3 : memref<!tpu.dma_semaphore, #tpu.memory_space<semaphore_mem>>)
    %c0_i32_4 = arith.constant 0 : i32
    %c0_i32_5 = arith.constant 0 : i32
    %c0_i32_6 = arith.constant 0 : i32
    %4 = tpu.memref_slice %arg0[%c0_i32_5, %c0_i32_6] : memref<8x32xf32, #tpu.memory_space<any>> -> memref<8x32xf32, #tpu.memory_space<any>>
    %c0_i32_7 = arith.constant 0 : i32
    %c0_i32_8 = arith.constant 0 : i32
    %5 = tpu.memref_slice %arg1[%c0_i32_7, %c0_i32_8] : memref<8x32xf32, #tpu.memory_space<any>> -> memref<8x32xf32, #tpu.memory_space<any>>
    %6 = tpu.memref_slice %arg2[%c0_i32_4] : memref<1x!tpu.dma_semaphore, #tpu.memory_space<semaphore_mem>> -> memref<1x!tpu.dma_semaphore, #tpu.memory_space<semaphore_mem>>
    %7 = tpu.memref_squeeze %6 : memref<1x!tpu.dma_semaphore, #tpu.memory_space<semaphore_mem>> -> memref<!tpu.dma_semaphore, #tpu.memory_space<semaphore_mem>>
    tpu.wait_dma2 semaphore(%7 : memref<!tpu.dma_semaphore, #tpu.memory_space<semaphore_mem>>) src(%4 : memref<8x32xf32, #tpu.memory_space<any>>) dst(%5 : memref<8x32xf32, #tpu.memory_space<any>>)
    return
  }
}

</mosaic_0001>

<llo_original>
// kernel: tpu_custom_call.1
$region0: #{tpu_custom_call.1}
  #allocation0 [shape = 'u32[]', space=smem, size = 0x4, offset = 0x4, fixed_abs, tag = 'smem constant byte address 0x4 - core index']
  #allocation1 [shape = 'u32[144,128]{1,0:T(1,128)}', space=vmem, size = 0x12000, scoped, tag = 'internal scratch']
  #allocation2 [shape = 's32[1]{0}', space=sflag, size = 0x4, scoped, tag = 'scratch operand']
  #allocation3 [shape = 's32[]', space=sflag, size = 0x4, offset = 0, fixed_abs, tag = 'sflag constant byte address 0x0 - dummy sync flag']
  #allocation4 [shape = 'u32[0]{0}', space=smem, size = 0, offset = 0, fixed_abs, tag = 'smem constant byte address 0x0 - null']
  %s0 = inlined_call_operand.hbm [shape: f32[8,32], index: 0, kind: input, shape index: {}]
  %s1 = inlined_call_operand.hbm [shape: f32[8,32], index: 1, kind: output, shape index: {}]
  %s2 = sld [smem:[#allocation0]]
  $region2: #{tpu_custom_call.1} parent=0
    _
  %s4 = ssub.s32 1, %s2
  %s5 = scalar_select 0, %s4, %s2
  %s7 = sshll.u32 1, 14
  %s8 = sxor.u32 4294967295, %s7
  %12 = dma.general %s0, 128, %s1, [#allocation2], 131072, [#allocation4], 0, 0
  %s13 = smul.u32 8, 1
  %s14 = sshll.u32 %s13, 4
  %15 = dma.done [#allocation2], %s14
  %16 = vsyncmov [#allocation2]
  %s17 = vpop.sfrf %16
  %p18 = scmp.eq.s32.totalorder %s17, 0
  %p19 = pneg %p18
  %21 = shalt.err (%p19)

</llo_original>
